<compile_context>
chip_gen: v6e
topology: v6e:2x2x1
jax: 0.10.0
libtpu: 0.0.40
codegen_flags: <defaults>
</compile_context>

<pallas_src>
import functools

import jax
import jax.numpy as jnp
from jax import lax
from jax.experimental import pallas as pl
from jax.experimental.pallas import tpu as pltpu


# ------------------------------ helpers ------------------------------------ #
def _round_up(x, m):
    return ((x + m - 1) // m) * m


def _activation(y, act):
    if act == "tanh":
        return jnp.tanh(y)
    if act == "relu":
        return jnp.maximum(y, 0.0)
    raise ValueError(f"unsupported activation: {act}")


def _layernorm_affine_act(z, g, beta, eps, act):
    """LayerNorm (f32) + affine + activation over the last axis."""
    mu = jnp.mean(z, axis=-1, keepdims=True)
    c = z - mu
    var = jnp.mean(c * c, axis=-1, keepdims=True)
    y = c * lax.rsqrt(var + eps) * g + beta
    return _activation(y, act)


# ----------------------------- Pallas kernel ------------------------------- #
def _fused_mlp_kernel(x_ref, *refs, n_shared, fused_seg, n_pi_rest, n_vf_rest,
                      eps, act, compute_dtype):
    """Whole-network forward for one batch tile.

    refs = [w0,b0,g0,beta0, w1,b1,g1,beta1, ...,  pi_out_ref, vf_out_ref]
    Layer order: shared layers, optional fused branch-0 (pi|vf concatenated on
    the lane axis), remaining pi layers, remaining vf layers.
    """
    param_refs = refs[:-2]
    pi_ref, vf_ref = refs[-2], refs[-1]

    def params(idx):
        return param_refs[4 * idx:4 * idx + 4]

    def dense_ln_act(x, w_ref, b_ref, g_ref, beta_ref):
        z = jnp.dot(x.astype(compute_dtype), w_ref[...],
                    preferred_element_type=jnp.float32) + b_ref[...]
        return _layernorm_affine_act(z, g_ref[...], beta_ref[...], eps, act)

    x = x_ref[...].astype(jnp.float32)
    li = 0
    for _ in range(n_shared):
        x = dense_ln_act(x, *params(li))
        li += 1

    if fused_seg is not None:
        # One MXU pass over the concatenated (pi | vf) weight; per-segment
        # LayerNorm on lane-aligned (multiple-of-128) slices.
        n_pi0, n_vf0 = fused_seg
        w_ref, b_ref, g_ref, beta_ref = params(li)
        li += 1
        z = jnp.dot(x.astype(compute_dtype), w_ref[...],
                    preferred_element_type=jnp.float32) + b_ref[...]
        pi = _layernorm_affine_act(z[:, :n_pi0], g_ref[:, :n_pi0],
                                   beta_ref[:, :n_pi0], eps, act)
        vf = _layernorm_affine_act(z[:, n_pi0:], g_ref[:, n_pi0:],
                                   beta_ref[:, n_pi0:], eps, act)
    else:
        pi = x
        vf = x

    for _ in range(n_pi_rest):
        pi = dense_ln_act(pi, *params(li))
        li += 1
    for _ in range(n_vf_rest):
        vf = dense_ln_act(vf, *params(li))
        li += 1

    pi_ref[...] = pi.astype(pi_ref.dtype)
    vf_ref[...] = vf.astype(vf_ref.dtype)


# --------------------------- parameter preparation ------------------------- #
def prepare_params(raw_params, *, compute_dtype=jnp.bfloat16):
    """One-time conversion of PyTorch-style params to kernel layout.

    raw_params: dict with keys 'shared', 'pi', 'vf'; each a list of
                (W (out,in), b (out,), gamma (out,), beta (out,)).
    Weights are transposed to (in, out) and cast to `compute_dtype` (MXU
    inputs); bias / gamma / beta stay f32 (post-matmul epilogue is f32).
    The first pi/vf layers are concatenated on the lane axis when both widths
    are multiples of 128 (shared input -> one matmul).
    """
    def prep(layer):
        W, b, g, beta = layer
        return (jnp.asarray(W, jnp.float32).T.astype(compute_dtype),
                jnp.asarray(b, jnp.float32).reshape(1, -1),
                jnp.asarray(g, jnp.float32).reshape(1, -1),
                jnp.asarray(beta, jnp.float32).reshape(1, -1))

    shared = [prep(l) for l in raw_params["shared"]]
    pi = [prep(l) for l in raw_params["pi"]]
    vf = [prep(l) for l in raw_params["vf"]]

    fused = None
    if pi and vf:
        Wp, bp, gp, btp = pi[0]
        Wv, bv, gv, btv = vf[0]
        n_pi0, n_vf0 = int(Wp.shape[1]), int(Wv.shape[1])
        if n_pi0 % 128 == 0 and n_vf0 % 128 == 0:   # keep slices lane-aligned
            fused = (jnp.concatenate([Wp, Wv], axis=1),
                     jnp.concatenate([bp, bv], axis=1),
                     jnp.concatenate([gp, gv], axis=1),
                     jnp.concatenate([btp, btv], axis=1),
                     n_pi0, n_vf0)
            pi, vf = pi[1:], vf[1:]

    return {"shared": shared, "branch0_fused": fused,
            "pi_rest": pi, "vf_rest": vf, "compute_dtype": compute_dtype}


# ------------------------------- forward pass ------------------------------ #
def mlp_extractor_norm_forward(features, kparams, *, act="tanh", eps=1e-5,
                               tm_cap=512):
    """MlpExtractorNorm.forward -> (latent_policy, latent_value), fused."""
    x = jnp.asarray(features, jnp.float32)
    M, feature_dim = x.shape
    compute_dtype = kparams["compute_dtype"]
    shared = kparams["shared"]
    fused = kparams["branch0_fused"]
    pi_rest = kparams["pi_rest"]
    vf_rest = kparams["vf_rest"]

    # Flatten params in the exact order the kernel consumes them and track
    # per-layer (K, N) for the cost estimate / output widths.
    flat, layer_dims = [], []
    d = feature_dim
    for layer in shared:
        flat.extend(layer)
        layer_dims.append((d, int(layer[0].shape[1])))
        d = int(layer[0].shape[1])
    d_pi = d_vf = d
    fused_seg = None
    if fused is not None:
        wt, b, g, beta, n_pi0, n_vf0 = fused
        flat.extend((wt, b, g, beta))
        layer_dims.append((d, n_pi0 + n_vf0))
        fused_seg = (n_pi0, n_vf0)
        d_pi, d_vf = n_pi0, n_vf0
    for layer in pi_rest:
        flat.extend(layer)
        layer_dims.append((d_pi, int(layer[0].shape[1])))
        d_pi = int(layer[0].shape[1])
    for layer in vf_rest:
        flat.extend(layer)
        layer_dims.append((d_vf, int(layer[0].shape[1])))
        d_vf = int(layer[0].shape[1])

    # Batch tiling: sublane-aligned, >= 2 grid steps when possible (so
    # "parallel" shards across both TensorCores on v7x), capped for VMEM.
    TM = max(8, min(tm_cap, _round_up(pl.cdiv(M, 2), 8)))
    grid = (pl.cdiv(M, TM),)   # ragged last tile handled by Pallas (masked)

    x_spec = pl.BlockSpec((TM, feature_dim), lambda i: (i, 0))
    const_specs = [pl.BlockSpec(p.shape, lambda i: (0, 0)) for p in flat]
    out_specs = [pl.BlockSpec((TM, d_pi), lambda i: (i, 0)),
                 pl.BlockSpec((TM, d_vf), lambda i: (i, 0))]
    out_shape = (jax.ShapeDtypeStruct((M, d_pi), jnp.float32),
                 jax.ShapeDtypeStruct((M, d_vf), jnp.float32))

    kernel = functools.partial(
        _fused_mlp_kernel,
        n_shared=len(shared), fused_seg=fused_seg,
        n_pi_rest=len(pi_rest), n_vf_rest=len(vf_rest),
        eps=float(eps), act=act, compute_dtype=compute_dtype)

    flops = int(sum(2 * M * k * n + 8 * M * n for k, n in layer_dims))
    transc = int(sum(M * n for _, n in layer_dims))          # tanh dominates
    param_bytes = int(sum(p.size * p.dtype.itemsize for p in flat))
    bytes_accessed = int(4 * M * feature_dim + param_bytes + 4 * M * (d_pi + d_vf))
    cost = pl.CostEstimate(flops=flops, transcendentals=transc,
                           bytes_accessed=bytes_accessed)

    pi_out, vf_out = pl.pallas_call(
        kernel,
        out_shape=out_shape,
        grid_spec=pltpu.PrefetchScalarGridSpec(
            num_scalar_prefetch=0,
            grid=grid,
            in_specs=[x_spec] + const_specs,
            out_specs=out_specs),
        compiler_params=pltpu.CompilerParams(
            dimension_semantics=("parallel",),        # megacore-shardable
            vmem_limit_bytes=32 * 1024 * 1024),       # safe on v5e/v6e/v7x
        cost_estimate=cost,
    )(x, *flat)
    return pi_out, vf_out


# --------------------------- pure-JAX reference ---------------------------- #
def _reference_forward(features, raw_params, *, act="tanh", eps=1e-5):
    def layer(x, W, b, g, beta):
        z = x @ W.T + b
        mu = z.mean(-1, keepdims=True)
        var = ((z - mu) ** 2).mean(-1, keepdims=True)
        y = (z - mu) / jnp.sqrt(var + eps) * g + beta
        return jnp.tanh(y) if act == "tanh" else jnp.maximum(y, 0.0)

    x = features
    for p in raw_params["shared"]:
        x = layer(x, *p)
    pi, vf = x, x
    for p in raw_params["pi"]:
        pi = layer(pi, *p)
    for p in raw_params["vf"]:
        vf = layer(vf, *p)
    return pi, vf


# ---------------------------------- main ----------------------------------- #
if __name__ == "__main__":
    # net_arch = [128, dict(pi=[128], vf=[128])], feature_dim = 64, Tanh
    # activation (stable-baselines default).
    batch, feature_dim = 16, 64
    shared_sizes, pi_sizes, vf_sizes = [128], [128], [128]
    act = "tanh"

    key = jax.random.PRNGKey(0)

    def make_layer(k, d_in, d_out):
        k1, k2, k3, k4 = jax.random.split(k, 4)
        bound = 1.0 / jnp.sqrt(jnp.float32(d_in))
        W = jax.random.uniform(k1, (d_out, d_in), jnp.float32, -bound, bound)
        b = jax.random.uniform(k2, (d_out,), jnp.float32, -bound, bound)
        gamma = 1.0 + 0.1 * jax.random.normal(k3, (d_out,), jnp.float32)
        beta = 0.1 * jax.random.normal(k4, (d_out,), jnp.float32)
        return (W, b, gamma, beta)

    def make_net(k, d_in, sizes):
        layers, last = [], d_in
        for s in sizes:
            k, sub = jax.random.split(k)
            layers.append(make_layer(sub, last, s))
            last = s
        return layers, last, k

    key, xk = jax.random.split(key)
    features = jax.random.normal(xk, (batch, feature_dim), jnp.float32)

    shared, last_shared, key = make_net(key, feature_dim, shared_sizes)
    pi_net, latent_dim_pi, key = make_net(key, last_shared, pi_sizes)
    vf_net, latent_dim_vf, key = make_net(key, last_shared, vf_sizes)

    raw_params = {"shared": shared, "pi": pi_net, "vf": vf_net}
    ref_pi, ref_vf = _reference_forward(features, raw_params, act=act)

    # Default path: bf16 MXU inputs, f32 accumulation / LayerNorm / tanh.
    kparams_bf16 = prepare_params(raw_params, compute_dtype=jnp.bfloat16)
    latent_pi, latent_vf = mlp_extractor_norm_forward(features, kparams_bf16,
                                                      act=act)
    latent_pi = jax.block_until_ready(latent_pi)
    latent_vf = jax.block_until_ready(latent_vf)

    assert latent_pi.shape == (batch, latent_dim_pi), latent_pi.shape
    assert latent_vf.shape == (batch, latent_dim_vf), latent_vf.shape
    assert latent_pi.dtype == jnp.float32 and latent_vf.dtype == jnp.float32
    assert jnp.allclose(latent_pi, ref_pi, atol=3e-2, rtol=3e-2), "pi mismatch (bf16)"
    assert jnp.allclose(latent_vf, ref_vf, atol=3e-2, rtol=3e-2), "vf mismatch (bf16)"

    # Full-precision path: tight tolerance against the reference.
    kparams_f32 = prepare_params(raw_params, compute_dtype=jnp.float32)
    pi32, vf32 = mlp_extractor_norm_forward(features, kparams_f32, act=act)
    pi32 = jax.block_until_ready(pi32)
    vf32 = jax.block_until_ready(vf32)
    assert jnp.allclose(pi32, ref_pi, atol=1e-4, rtol=1e-4), "pi mismatch (f32)"
    assert jnp.allclose(vf32, ref_vf, atol=1e-4, rtol=1e-4), "vf mismatch (f32)"

    print("KERNEL_OK")
</pallas_src>

<mosaic_0001>
module attributes {stable_mosaic.version = 11 : i64} {
  func.func @_fused_mlp_kernel(%arg0: i32, %arg1: memref<8x64xf32, #tpu.memory_space<vmem>>, %arg2: memref<64x128xbf16, #tpu.memory_space<vmem>>, %arg3: memref<1x128xf32, #tpu.memory_space<vmem>>, %arg4: memref<1x128xf32, #tpu.memory_space<vmem>>, %arg5: memref<1x128xf32, #tpu.memory_space<vmem>>, %arg6: memref<128x256xbf16, #tpu.memory_space<vmem>>, %arg7: memref<1x256xf32, #tpu.memory_space<vmem>>, %arg8: memref<1x256xf32, #tpu.memory_space<vmem>>, %arg9: memref<1x256xf32, #tpu.memory_space<vmem>>, %arg10: memref<8x128xf32, #tpu.memory_space<vmem>>, %arg11: memref<8x128xf32, #tpu.memory_space<vmem>>) attributes {dimension_semantics = [#tpu.dimension_semantics<parallel>], iteration_bounds = array<i64: 2>, scalar_prefetch = 0 : i64, scratch_operands = 0 : i64, tpu.core_type = #tpu.core_type<tc>, window_params = [{transform_indices = @transform_0, window_bounds = array<i64: 8, 64>}, {pipeline_mode = #tpu.pipeline_mode<synchronous>, transform_indices = @transform_1, window_bounds = array<i64: 64, 128>}, {pipeline_mode = #tpu.pipeline_mode<synchronous>, transform_indices = @transform_2, window_bounds = array<i64: 1, 128>}, {pipeline_mode = #tpu.pipeline_mode<synchronous>, transform_indices = @transform_3, window_bounds = array<i64: 1, 128>}, {pipeline_mode = #tpu.pipeline_mode<synchronous>, transform_indices = @transform_4, window_bounds = array<i64: 1, 128>}, {pipeline_mode = #tpu.pipeline_mode<synchronous>, transform_indices = @transform_5, window_bounds = array<i64: 128, 256>}, {pipeline_mode = #tpu.pipeline_mode<synchronous>, transform_indices = @transform_6, window_bounds = array<i64: 1, 256>}, {pipeline_mode = #tpu.pipeline_mode<synchronous>, transform_indices = @transform_7, window_bounds = array<i64: 1, 256>}, {pipeline_mode = #tpu.pipeline_mode<synchronous>, transform_indices = @transform_8, window_bounds = array<i64: 1, 256>}, {transform_indices = @transform_9, window_bounds = array<i64: 8, 128>}, {transform_indices = @transform_10, window_bounds = array<i64: 8, 128>}]} {
    %c0 = arith.constant 0 : index
    %c0_0 = arith.constant 0 : index
    %0 = vector.load %arg1[%c0, %c0_0] : memref<8x64xf32, #tpu.memory_space<vmem>>, vector<8x64xf32>
    %1 = arith.truncf %0 : vector<8x64xf32> to vector<8x64xbf16>
    %c0_1 = arith.constant 0 : index
    %c0_2 = arith.constant 0 : index
    %2 = vector.load %arg2[%c0_1, %c0_2] : memref<64x128xbf16, #tpu.memory_space<vmem>>, vector<64x128xbf16>
    %cst = arith.constant dense<0.000000e+00> : vector<8x128xf32>
    %3 = tpu.matmul %1, %2, %cst {dimension_numbers = #tpu.dot_dimension_numbers<[1], [0], [0], [1], [0, 0, 1, 1], [], []>} : vector<8x64xbf16>, vector<64x128xbf16>, vector<8x128xf32> -> vector<8x128xf32>
    %c0_3 = arith.constant 0 : index
    %c0_4 = arith.constant 0 : index
    %4 = vector.load %arg3[%c0_3, %c0_4] : memref<1x128xf32, #tpu.memory_space<vmem>>, vector<1x128xf32>
    %5 = vector.broadcast %4 : vector<1x128xf32> to vector<8x128xf32>
    %6 = arith.addf %3, %5 : vector<8x128xf32>
    %c0_5 = arith.constant 0 : index
    %c0_6 = arith.constant 0 : index
    %7 = vector.load %arg4[%c0_5, %c0_6] : memref<1x128xf32, #tpu.memory_space<vmem>>, vector<1x128xf32>
    %c0_7 = arith.constant 0 : index
    %c0_8 = arith.constant 0 : index
    %8 = vector.load %arg5[%c0_7, %c0_8] : memref<1x128xf32, #tpu.memory_space<vmem>>, vector<1x128xf32>
    %cst_9 = arith.constant dense<0.000000e+00> : vector<8xf32>
    %9 = vector.multi_reduction <add>, %6, %cst_9 [1] : vector<8x128xf32> to vector<8xf32>
    %10 = vector.shape_cast %9 : vector<8xf32> to vector<8x1xf32>
    %cst_10 = arith.constant 1.280000e+02 : f32
    %11 = vector.broadcast %cst_10 : f32 to vector<8x1xf32>
    %12 = arith.divf %10, %11 : vector<8x1xf32>
    %13 = vector.broadcast %12 : vector<8x1xf32> to vector<8x128xf32>
    %14 = arith.subf %6, %13 : vector<8x128xf32>
    %15 = arith.mulf %14, %14 : vector<8x128xf32>
    %cst_11 = arith.constant dense<0.000000e+00> : vector<8xf32>
    %16 = vector.multi_reduction <add>, %15, %cst_11 [1] : vector<8x128xf32> to vector<8xf32>
    %17 = vector.shape_cast %16 : vector<8xf32> to vector<8x1xf32>
    %cst_12 = arith.constant 1.280000e+02 : f32
    %18 = vector.broadcast %cst_12 : f32 to vector<8x1xf32>
    %19 = arith.divf %17, %18 : vector<8x1xf32>
    %cst_13 = arith.constant 9.99999974E-6 : f32
    %20 = vector.broadcast %cst_13 : f32 to vector<8x1xf32>
    %21 = arith.addf %19, %20 : vector<8x1xf32>
    %22 = math.rsqrt %21 : vector<8x1xf32>
    %23 = vector.broadcast %22 : vector<8x1xf32> to vector<8x128xf32>
    %24 = arith.mulf %14, %23 : vector<8x128xf32>
    %25 = vector.broadcast %7 : vector<1x128xf32> to vector<8x128xf32>
    %26 = arith.mulf %24, %25 : vector<8x128xf32>
    %27 = vector.broadcast %8 : vector<1x128xf32> to vector<8x128xf32>
    %28 = arith.addf %26, %27 : vector<8x128xf32>
    %29 = math.tanh %28 : vector<8x128xf32>
    %30 = arith.truncf %29 : vector<8x128xf32> to vector<8x128xbf16>
    %c0_14 = arith.constant 0 : index
    %c0_15 = arith.constant 0 : index
    %31 = vector.load %arg6[%c0_14, %c0_15] : memref<128x256xbf16, #tpu.memory_space<vmem>>, vector<128x256xbf16>
    %cst_16 = arith.constant dense<0.000000e+00> : vector<8x256xf32>
    %32 = tpu.matmul %30, %31, %cst_16 {dimension_numbers = #tpu.dot_dimension_numbers<[1], [0], [0], [1], [0, 0, 1, 1], [], []>} : vector<8x128xbf16>, vector<128x256xbf16>, vector<8x256xf32> -> vector<8x256xf32>
    %c0_17 = arith.constant 0 : index
    %c0_18 = arith.constant 0 : index
    %33 = vector.load %arg7[%c0_17, %c0_18] : memref<1x256xf32, #tpu.memory_space<vmem>>, vector<1x256xf32>
    %34 = vector.broadcast %33 : vector<1x256xf32> to vector<8x256xf32>
    %35 = arith.addf %32, %34 : vector<8x256xf32>
    %36 = vector.extract_strided_slice %35 {offsets = [0, 0], sizes = [8, 128], strides = [1, 1]} : vector<8x256xf32> to vector<8x128xf32>
    %c0_19 = arith.constant 0 : index
    %c0_20 = arith.constant 0 : index
    %37 = vector.load %arg8[%c0_19, %c0_20] : memref<1x256xf32, #tpu.memory_space<vmem>>, vector<1x128xf32>
    %c0_21 = arith.constant 0 : index
    %c0_22 = arith.constant 0 : index
    %38 = vector.load %arg9[%c0_21, %c0_22] : memref<1x256xf32, #tpu.memory_space<vmem>>, vector<1x128xf32>
    %cst_23 = arith.constant dense<0.000000e+00> : vector<8xf32>
    %39 = vector.multi_reduction <add>, %36, %cst_23 [1] : vector<8x128xf32> to vector<8xf32>
    %40 = vector.shape_cast %39 : vector<8xf32> to vector<8x1xf32>
    %cst_24 = arith.constant 1.280000e+02 : f32
    %41 = vector.broadcast %cst_24 : f32 to vector<8x1xf32>
    %42 = arith.divf %40, %41 : vector<8x1xf32>
    %43 = vector.broadcast %42 : vector<8x1xf32> to vector<8x128xf32>
    %44 = arith.subf %36, %43 : vector<8x128xf32>
    %45 = arith.mulf %44, %44 : vector<8x128xf32>
    %cst_25 = arith.constant dense<0.000000e+00> : vector<8xf32>
    %46 = vector.multi_reduction <add>, %45, %cst_25 [1] : vector<8x128xf32> to vector<8xf32>
    %47 = vector.shape_cast %46 : vector<8xf32> to vector<8x1xf32>
    %cst_26 = arith.constant 1.280000e+02 : f32
    %48 = vector.broadcast %cst_26 : f32 to vector<8x1xf32>
    %49 = arith.divf %47, %48 : vector<8x1xf32>
    %cst_27 = arith.constant 9.99999974E-6 : f32
    %50 = vector.broadcast %cst_27 : f32 to vector<8x1xf32>
    %51 = arith.addf %49, %50 : vector<8x1xf32>
    %52 = math.rsqrt %51 : vector<8x1xf32>
    %53 = vector.broadcast %52 : vector<8x1xf32> to vector<8x128xf32>
    %54 = arith.mulf %44, %53 : vector<8x128xf32>
    %55 = vector.broadcast %37 : vector<1x128xf32> to vector<8x128xf32>
    %56 = arith.mulf %54, %55 : vector<8x128xf32>
    %57 = vector.broadcast %38 : vector<1x128xf32> to vector<8x128xf32>
    %58 = arith.addf %56, %57 : vector<8x128xf32>
    %59 = math.tanh %58 : vector<8x128xf32>
    %60 = vector.extract_strided_slice %35 {offsets = [0, 128], sizes = [8, 128], strides = [1, 1]} : vector<8x256xf32> to vector<8x128xf32>
    %c0_28 = arith.constant 0 : index
    %c128 = arith.constant 128 : index
    %61 = vector.load %arg8[%c0_28, %c128] : memref<1x256xf32, #tpu.memory_space<vmem>>, vector<1x128xf32>
    %c0_29 = arith.constant 0 : index
    %c128_30 = arith.constant 128 : index
    %62 = vector.load %arg9[%c0_29, %c128_30] : memref<1x256xf32, #tpu.memory_space<vmem>>, vector<1x128xf32>
    %cst_31 = arith.constant dense<0.000000e+00> : vector<8xf32>
    %63 = vector.multi_reduction <add>, %60, %cst_31 [1] : vector<8x128xf32> to vector<8xf32>
    %64 = vector.shape_cast %63 : vector<8xf32> to vector<8x1xf32>
    %cst_32 = arith.constant 1.280000e+02 : f32
    %65 = vector.broadcast %cst_32 : f32 to vector<8x1xf32>
    %66 = arith.divf %64, %65 : vector<8x1xf32>
    %67 = vector.broadcast %66 : vector<8x1xf32> to vector<8x128xf32>
    %68 = arith.subf %60, %67 : vector<8x128xf32>
    %69 = arith.mulf %68, %68 : vector<8x128xf32>
    %cst_33 = arith.constant dense<0.000000e+00> : vector<8xf32>
    %70 = vector.multi_reduction <add>, %69, %cst_33 [1] : vector<8x128xf32> to vector<8xf32>
    %71 = vector.shape_cast %70 : vector<8xf32> to vector<8x1xf32>
    %cst_34 = arith.constant 1.280000e+02 : f32
    %72 = vector.broadcast %cst_34 : f32 to vector<8x1xf32>
    %73 = arith.divf %71, %72 : vector<8x1xf32>
    %cst_35 = arith.constant 9.99999974E-6 : f32
    %74 = vector.broadcast %cst_35 : f32 to vector<8x1xf32>
    %75 = arith.addf %73, %74 : vector<8x1xf32>
    %76 = math.rsqrt %75 : vector<8x1xf32>
    %77 = vector.broadcast %76 : vector<8x1xf32> to vector<8x128xf32>
    %78 = arith.mulf %68, %77 : vector<8x128xf32>
    %79 = vector.broadcast %61 : vector<1x128xf32> to vector<8x128xf32>
    %80 = arith.mulf %78, %79 : vector<8x128xf32>
    %81 = vector.broadcast %62 : vector<1x128xf32> to vector<8x128xf32>
    %82 = arith.addf %80, %81 : vector<8x128xf32>
    %83 = math.tanh %82 : vector<8x128xf32>
    %c0_36 = arith.constant 0 : index
    %c0_37 = arith.constant 0 : index
    %84 = vector.load %arg10[%c0_36, %c0_37] : memref<8x128xf32, #tpu.memory_space<vmem>>, vector<8x128xf32>
    tpu.vector_store %arg10[%c0_36, %c0_37], %59 {strides = array<i32>} : memref<8x128xf32, #tpu.memory_space<vmem>>, vector<8x128xf32>,
    %c0_38 = arith.constant 0 : index
    %c0_39 = arith.constant 0 : index
    %85 = vector.load %arg11[%c0_38, %c0_39] : memref<8x128xf32, #tpu.memory_space<vmem>>, vector<8x128xf32>
    tpu.vector_store %arg11[%c0_38, %c0_39], %83 {strides = array<i32>} : memref<8x128xf32, #tpu.memory_space<vmem>>, vector<8x128xf32>,
    return
  }
  func.func @transform_0(%arg0: i32) -> (i32, i32) {
    %c0_i32 = arith.constant 0 : i32
    %c0_i32_0 = arith.constant 0 : i32
    return %arg0, %c0_i32 : i32, i32
  }
  func.func @transform_1(%arg0: i32) -> (i32, i32) {
    %c0_i32 = arith.constant 0 : i32
    %c0_i32_0 = arith.constant 0 : i32
    %c0_i32_1 = arith.constant 0 : i32
    return %c0_i32, %c0_i32_0 : i32, i32
  }
  func.func @transform_2(%arg0: i32) -> (i32, i32) {
    %c0_i32 = arith.constant 0 : i32
    %c0_i32_0 = arith.constant 0 : i32
    %c0_i32_1 = arith.constant 0 : i32
    return %c0_i32, %c0_i32_0 : i32, i32
  }
  func.func @transform_3(%arg0: i32) -> (i32, i32) {
    %c0_i32 = arith.constant 0 : i32
    %c0_i32_0 = arith.constant 0 : i32
    %c0_i32_1 = arith.constant 0 : i32
    return %c0_i32, %c0_i32_0 : i32, i32
  }
  func.func @transform_4(%arg0: i32) -> (i32, i32) {
    %c0_i32 = arith.constant 0 : i32
    %c0_i32_0 = arith.constant 0 : i32
    %c0_i32_1 = arith.constant 0 : i32
    return %c0_i32, %c0_i32_0 : i32, i32
  }
  func.func @transform_5(%arg0: i32) -> (i32, i32) {
    %c0_i32 = arith.constant 0 : i32
    %c0_i32_0 = arith.constant 0 : i32
    %c0_i32_1 = arith.constant 0 : i32
    return %c0_i32, %c0_i32_0 : i32, i32
  }
  func.func @transform_6(%arg0: i32) -> (i32, i32) {
    %c0_i32 = arith.constant 0 : i32
    %c0_i32_0 = arith.constant 0 : i32
    %c0_i32_1 = arith.constant 0 : i32
    return %c0_i32, %c0_i32_0 : i32, i32
  }
  func.func @transform_7(%arg0: i32) -> (i32, i32) {
    %c0_i32 = arith.constant 0 : i32
    %c0_i32_0 = arith.constant 0 : i32
    %c0_i32_1 = arith.constant 0 : i32
    return %c0_i32, %c0_i32_0 : i32, i32
  }
  func.func @transform_8(%arg0: i32) -> (i32, i32) {
    %c0_i32 = arith.constant 0 : i32
    %c0_i32_0 = arith.constant 0 : i32
    %c0_i32_1 = arith.constant 0 : i32
    return %c0_i32, %c0_i32_0 : i32, i32
  }
  func.func @transform_9(%arg0: i32) -> (i32, i32) {
    %c0_i32 = arith.constant 0 : i32
    %c0_i32_0 = arith.constant 0 : i32
    return %arg0, %c0_i32 : i32, i32
  }
  func.func @transform_10(%arg0: i32) -> (i32, i32) {
    %c0_i32 = arith.constant 0 : i32
    %c0_i32_0 = arith.constant 0 : i32
    return %arg0, %c0_i32 : i32, i32
  }
}

</mosaic_0001>

<llo_original>
// kernel: tpu_custom_call.1
$region0: #{tpu_custom_call.1}
  #allocation0 [shape = 'u32[]', space=smem, size = 0x4, offset = 0x4, fixed_abs, tag = 'smem constant byte address 0x4 - core index']
  #allocation1 [shape = 'u32[144,128]{1,0:T(1,128)}', space=vmem, size = 0x12000, scoped, tag = 'internal scratch']
  %s0 = inlined_call_operand.hbm [shape: f32[16,64], index: 0, kind: input, shape index: {}]
  %s1 = inlined_call_operand.hbm [shape: bf16[64,128], index: 1, kind: input, shape index: {}]
  %s2 = inlined_call_operand.vmem [shape: f32[1,128], index: 2, kind: input, shape index: {}]
  %s3 = inlined_call_operand.hbm [shape: f32[1,128], index: 3, kind: input, shape index: {}]
  %s4 = inlined_call_operand.hbm [shape: f32[1,128], index: 4, kind: input, shape index: {}]
  %s5 = inlined_call_operand.hbm [shape: bf16[128,256], index: 5, kind: input, shape index: {}]
  %s6 = inlined_call_operand.vmem [shape: f32[1,256], index: 6, kind: input, shape index: {}]
  %s7 = inlined_call_operand.vmem [shape: f32[1,256], index: 7, kind: input, shape index: {}]
  %s8 = inlined_call_operand.vmem [shape: f32[1,256], index: 8, kind: input, shape index: {}]
  %s9 = inlined_call_operand.hbm [shape: f32[16,128], index: 9, kind: output, shape index: {0}]
  %s10 = inlined_call_operand.hbm [shape: f32[16,128], index: 10, kind: output, shape index: {1}]
  %11 = xla_tuple %s9, %s10
  %s12 = sld [smem:[#allocation0]]
  $region97: #{tpu_custom_call.1} parent=0
    _
  %s14 = ssub.s32 1, %s12
  %s15 = scalar_select 0, %s14, %s12
  $region1: #{tpu_custom_call.1} parent=0
    #allocation2 [shape = 'u8[8192]{0}', space=vmem, size = 0x2000, scoped, tag = 'input window, operand 0']
    #allocation3 [shape = 's32[2]{0}', space=sflag, size = 0x8, scoped, tag = 'scoped memory for tpu_custom_call.1']
    #allocation4 [shape = 's32[2]{0}', space=sflag, size = 0x8, scoped, tag = 'scoped memory for tpu_custom_call.1']
    #allocation5 [shape = 'u8[16384]{0}', space=vmem, size = 0x4000, scoped, tag = 'input window, operand 1, single buffered']
    #allocation6 [shape = 's32[1]{0}', space=sflag, size = 0x4, scoped, tag = 'scoped memory for tpu_custom_call.1']
    #allocation7 [shape = 'u8[512]{0}', space=vmem, size = 0x400, scoped, tag = 'input window, operand 3, single buffered']
    #allocation8 [shape = 'u8[512]{0}', space=vmem, size = 0x400, scoped, tag = 'input window, operand 4, single buffered']
    #allocation9 [shape = 's32[1]{0}', space=sflag, size = 0x4, scoped, tag = 'scoped memory for tpu_custom_call.1']
    #allocation10 [shape = 'u8[65536]{0}', space=vmem, size = 0x10000, scoped, tag = 'input window, operand 5, single buffered']
    #allocation11 [shape = 'u8[8192]{0}', space=vmem, size = 0x2000, scoped, tag = 'output window, operand 0']
    #allocation12 [shape = 'u8[8192]{0}', space=vmem, size = 0x2000, scoped, tag = 'output window, operand 1']
    #allocation13 [shape = 's32[2]{0}', space=sflag, size = 0x8, scoped, tag = 'scoped memory for tpu_custom_call.1']
    %16 = vsyncpa [#allocation3], 0
    %s17 = scalar_lea.sflag [#allocation3], 1
    %18 = vsyncpa %s17, 0
    %19 = vsyncpa [#allocation6], 0
    %20 = vsyncpa [#allocation9], 0
    %21 = vsyncpa [#allocation4], 0
    %s22 = scalar_lea.sflag [#allocation4], 1
    %23 = vsyncpa %s22, 0
    %24 = vsyncpa [#allocation13], 0
    %s25 = scalar_lea.sflag [#allocation13], 1
    %26 = vsyncpa %s25, 0
    loop: start=0, step=1, limit=4
    $region2: #{tpu_custom_call.1} parent=1 // loop_pre_header
      _
    $region3: #{tpu_custom_call.1} parent=1 // loop_header
      %s28 = sphi 0, %s32
      %p29 = scmp.ge.s32.totalorder %s28, 4
      %s38 = sphi 0, %s40
      %s41 = sphi 0, %s38
      %s42 = sphi 0, %s41
      %s58 = sphi 0, %s42
      %s62 = sphi 0, %s62
      %s64 = sphi 0, %s62
      %s65 = sphi 0, %s64
      %s79 = sphi 0, %s65
      %s83 = sphi 0, %s83
      %s85 = sphi 0, %s83
      %s86 = sphi 0, %s85
      %s100 = sphi 0, %s86
      %s104 = sphi 0, %s104
      %s106 = sphi 0, %s104
      %s107 = sphi 0, %s106
      %s121 = sphi 0, %s107
      %s125 = sphi 0, %s125
      %s127 = sphi 0, %s125
      %s128 = sphi 0, %s127
      %s142 = sphi 0, %s128
      %s146 = sphi 0, %s146
      %s148 = sphi 0, %s146
      %s149 = sphi 0, %s148
      %s163 = sphi 0, %s149
      %s167 = sphi 0, %s167
      %s169 = sphi 0, %s167
      %s170 = sphi 0, %s169
      %s184 = sphi 0, %s170
      %s188 = sphi 0, %s188
      %s190 = sphi 0, %s188
      %s191 = sphi 0, %s190
      %s205 = sphi 0, %s191
      %s209 = sphi 0, %s209
      %s211 = sphi 0, %s209
      %s212 = sphi 0, %s211
      %s226 = sphi 0, %s212
      %s232 = sphi 0, %s234
      %s235 = sphi 0, %s232
      %s236 = sphi 0, %s235
      %s252 = sphi 0, %s236
      %s258 = sphi 0, %s260
      %s261 = sphi 0, %s258
      %s262 = sphi 0, %s261
      %s278 = sphi 0, %s262
    $region4: #{tpu_custom_call.1} parent=1 // loop_header_branch
      %31 = sbr.rel (%p29) target = $region8
    $region5: #{tpu_custom_call.1} parent=1 // loop_body
      %s33 = ssub.s32 %s28, 1
      %s34 = ssub.s32 %s28, 2
      %s35 = sadd.s32 %s28, 1
      %s36 = ssub.s32 %s28, %s35
      %p37 = scmp.eq.s32.totalorder %s36, 0
      %s39 = sadd.s32 %s38, 1
      %s40 = scalar_select %p37, %s38, %s39
      %p43 = pneg %p37
      %p44 = scmp.eq.s32.totalorder %s28, 1
      %p45 = por %p43, %p44
      %p46 = scmp.ne.s32.totalorder %s38, %s41
      %p47 = scmp.eq.s32.totalorder %s28, 0
      %p48 = por %p46, %p47
      %p49 = scmp.ne.s32.totalorder %s38, %s41
      %p50 = scmp.eq.s32.totalorder %s33, 1
      %p51 = por %p49, %p50
      %p52 = scmp.ne.s32.totalorder %s41, %s42
      %p53 = scmp.eq.s32.totalorder %s33, 0
      %p54 = por %p52, %p53
      %p55 = scmp.ne.s32.totalorder %s41, %s42
      %p56 = scmp.eq.s32.totalorder %s34, 1
      %p57 = por %p55, %p56
      %p59 = scmp.ne.s32.totalorder %s42, %s58
      %p60 = scmp.eq.s32.totalorder %s34, 0
      %p61 = por %p59, %p60
      %s63 = sadd.s32 %s62, 1
      %p66 = scmp.eq.s32.totalorder %s28, 1
      %p67 = scmp.ne.s32.totalorder %s62, %s64
      %p68 = scmp.eq.s32.totalorder %s28, 0
      %p69 = por %p67, %p68
      %p70 = scmp.ne.s32.totalorder %s62, %s64
      %p71 = scmp.eq.s32.totalorder %s33, 1
      %p72 = por %p70, %p71
      %p73 = scmp.ne.s32.totalorder %s64, %s65
      %p74 = scmp.eq.s32.totalorder %s33, 0
      %p75 = por %p73, %p74
      %p76 = scmp.ne.s32.totalorder %s64, %s65
      %p77 = scmp.eq.s32.totalorder %s34, 1
      %p78 = por %p76, %p77
      %p80 = scmp.ne.s32.totalorder %s65, %s79
      %p81 = scmp.eq.s32.totalorder %s34, 0
      %p82 = por %p80, %p81
      %s84 = sadd.s32 %s83, 1
      %p87 = scmp.eq.s32.totalorder %s28, 1
      %p88 = scmp.ne.s32.totalorder %s83, %s85
      %p89 = scmp.eq.s32.totalorder %s28, 0
      %p90 = por %p88, %p89
      %p91 = scmp.ne.s32.totalorder %s83, %s85
      %p92 = scmp.eq.s32.totalorder %s33, 1
      %p93 = por %p91, %p92
      %p94 = scmp.ne.s32.totalorder %s85, %s86
      %p95 = scmp.eq.s32.totalorder %s33, 0
      %p96 = por %p94, %p95
      %p97 = scmp.ne.s32.totalorder %s85, %s86
      %p98 = scmp.eq.s32.totalorder %s34, 1
      %p99 = por %p97, %p98
      %p101 = scmp.ne.s32.totalorder %s86, %s100
      %p102 = scmp.eq.s32.totalorder %s34, 0
      %p103 = por %p101, %p102
      %s105 = sadd.s32 %s104, 1
      %p108 = scmp.eq.s32.totalorder %s28, 1
      %p109 = scmp.ne.s32.totalorder %s104, %s106
      %p110 = scmp.eq.s32.totalorder %s28, 0
      %p111 = por %p109, %p110
      %p112 = scmp.ne.s32.totalorder %s104, %s106
      %p113 = scmp.eq.s32.totalorder %s33, 1
      %p114 = por %p112, %p113
      %p115 = scmp.ne.s32.totalorder %s106, %s107
      %p116 = scmp.eq.s32.totalorder %s33, 0
      %p117 = por %p115, %p116
      %p118 = scmp.ne.s32.totalorder %s106, %s107
      %p119 = scmp.eq.s32.totalorder %s34, 1
      %p120 = por %p118, %p119
      %p122 = scmp.ne.s32.totalorder %s107, %s121
      %p123 = scmp.eq.s32.totalorder %s34, 0
      %p124 = por %p122, %p123
      %s126 = sadd.s32 %s125, 1
      %p129 = scmp.eq.s32.totalorder %s28, 1
      %p130 = scmp.ne.s32.totalorder %s125, %s127
      %p131 = scmp.eq.s32.totalorder %s28, 0
      %p132 = por %p130, %p131
      %p133 = scmp.ne.s32.totalorder %s125, %s127
      %p134 = scmp.eq.s32.totalorder %s33, 1
      %p135 = por %p133, %p134
      %p136 = scmp.ne.s32.totalorder %s127, %s128
      %p137 = scmp.eq.s32.totalorder %s33, 0
      %p138 = por %p136, %p137
      %p139 = scmp.ne.s32.totalorder %s127, %s128
      %p140 = scmp.eq.s32.totalorder %s34, 1
      %p141 = por %p139, %p140
      %p143 = scmp.ne.s32.totalorder %s128, %s142
      %p144 = scmp.eq.s32.totalorder %s34, 0
      %p145 = por %p143, %p144
      %s147 = sadd.s32 %s146, 1
      %p150 = scmp.eq.s32.totalorder %s28, 1
      %p151 = scmp.ne.s32.totalorder %s146, %s148
      %p152 = scmp.eq.s32.totalorder %s28, 0
      %p153 = por %p151, %p152
      %p154 = scmp.ne.s32.totalorder %s146, %s148
      %p155 = scmp.eq.s32.totalorder %s33, 1
      %p156 = por %p154, %p155
      %p157 = scmp.ne.s32.totalorder %s148, %s149
      %p158 = scmp.eq.s32.totalorder %s33, 0
      %p159 = por %p157, %p158
      %p160 = scmp.ne.s32.totalorder %s148, %s149
      %p161 = scmp.eq.s32.totalorder %s34, 1
      %p162 = por %p160, %p161
      %p164 = scmp.ne.s32.totalorder %s149, %s163
      %p165 = scmp.eq.s32.totalorder %s34, 0
      %p166 = por %p164, %p165
      %s168 = sadd.s32 %s167, 1
      %p171 = scmp.eq.s32.totalorder %s28, 1
      %p172 = scmp.ne.s32.totalorder %s167, %s169
      %p173 = scmp.eq.s32.totalorder %s28, 0
      %p174 = por %p172, %p173
      %p175 = scmp.ne.s32.totalorder %s167, %s169
      %p176 = scmp.eq.s32.totalorder %s33, 1
      %p177 = por %p175, %p176
      %p178 = scmp.ne.s32.totalorder %s169, %s170
      %p179 = scmp.eq.s32.totalorder %s33, 0
      %p180 = por %p178, %p179
      %p181 = scmp.ne.s32.totalorder %s169, %s170
      %p182 = scmp.eq.s32.totalorder %s34, 1
      %p183 = por %p181, %p182
      %p185 = scmp.ne.s32.totalorder %s170, %s184
      %p186 = scmp.eq.s32.totalorder %s34, 0
      %p187 = por %p185, %p186
      %s189 = sadd.s32 %s188, 1
      %p192 = scmp.eq.s32.totalorder %s28, 1
      %p193 = scmp.ne.s32.totalorder %s188, %s190
      %p194 = scmp.eq.s32.totalorder %s28, 0
      %p195 = por %p193, %p194
      %p196 = scmp.ne.s32.totalorder %s188, %s190
      %p197 = scmp.eq.s32.totalorder %s33, 1
      %p198 = por %p196, %p197
      %p199 = scmp.ne.s32.totalorder %s190, %s191
      %p200 = scmp.eq.s32.totalorder %s33, 0
      %p201 = por %p199, %p200
      %p202 = scmp.ne.s32.totalorder %s190, %s191
      %p203 = scmp.eq.s32.totalorder %s34, 1
      %p204 = por %p202, %p203
      %p206 = scmp.ne.s32.totalorder %s191, %s205
      %p207 = scmp.eq.s32.totalorder %s34, 0
      %p208 = por %p206, %p207
      %s210 = sadd.s32 %s209, 1
      %p213 = scmp.eq.s32.totalorder %s28, 1
      %p214 = scmp.ne.s32.totalorder %s209, %s211
      %p215 = scmp.eq.s32.totalorder %s28, 0
      %p216 = por %p214, %p215
      %p217 = scmp.ne.s32.totalorder %s209, %s211
      %p218 = scmp.eq.s32.totalorder %s33, 1
      %p219 = por %p217, %p218
      %p220 = scmp.ne.s32.totalorder %s211, %s212
      %p221 = scmp.eq.s32.totalorder %s33, 0
      %p222 = por %p220, %p221
      %p223 = scmp.ne.s32.totalorder %s211, %s212
      %p224 = scmp.eq.s32.totalorder %s34, 1
      %p225 = por %p223, %p224
      %p227 = scmp.ne.s32.totalorder %s212, %s226
      %p228 = scmp.eq.s32.totalorder %s34, 0
      %p229 = por %p227, %p228
      %s230 = ssub.s32 %s28, %s35
      %p231 = scmp.eq.s32.totalorder %s230, 0
      %s233 = sadd.s32 %s232, 1
      %s234 = scalar_select %p231, %s232, %s233
      %p237 = pneg %p231
      %p238 = scmp.eq.s32.totalorder %s28, 1
      %p239 = por %p237, %p238
      %p240 = scmp.ne.s32.totalorder %s232, %s235
      %p241 = scmp.eq.s32.totalorder %s28, 0
      %p242 = por %p240, %p241
      %p243 = scmp.ne.s32.totalorder %s232, %s235
      %p244 = scmp.eq.s32.totalorder %s33, 1
      %p245 = por %p243, %p244
      %p246 = scmp.ne.s32.totalorder %s235, %s236
      %p247 = scmp.eq.s32.totalorder %s33, 0
      %p248 = por %p246, %p247
      %p249 = scmp.ne.s32.totalorder %s235, %s236
      %p250 = scmp.eq.s32.totalorder %s34, 1
      %p251 = por %p249, %p250
      %p253 = scmp.ne.s32.totalorder %s236, %s252
      %p254 = scmp.eq.s32.totalorder %s34, 0
      %p255 = por %p253, %p254
      %s256 = ssub.s32 %s28, %s35
      %p257 = scmp.eq.s32.totalorder %s256, 0
      %s259 = sadd.s32 %s258, 1
      %s260 = scalar_select %p257, %s258, %s259
      %p263 = pneg %p257
      %p264 = scmp.eq.s32.totalorder %s28, 1
      %p265 = por %p263, %p264
      %p266 = scmp.ne.s32.totalorder %s258, %s261
      %p267 = scmp.eq.s32.totalorder %s28, 0
      %p268 = por %p266, %p267
      %p269 = scmp.ne.s32.totalorder %s258, %s261
      %p270 = scmp.eq.s32.totalorder %s33, 1
      %p271 = por %p269, %p270
      %p272 = scmp.ne.s32.totalorder %s261, %s262
      %p273 = scmp.eq.s32.totalorder %s33, 0
      %p274 = por %p272, %p273
      %p275 = scmp.ne.s32.totalorder %s261, %s262
      %p276 = scmp.eq.s32.totalorder %s34, 1
      %p277 = por %p275, %p276
      %p279 = scmp.ne.s32.totalorder %s262, %s278
      %p280 = scmp.eq.s32.totalorder %s34, 0
      %p281 = por %p279, %p280
      %p282 = scmp.le.s32.totalorder 1, %s28
      %p283 = scmp.lt.s32.totalorder %s28, 3
      %p284 = pnand %p282, %p283
      %p285 = pneg %p284
      // Predicated region
      $region9: #{tpu_custom_call.1} parent=5 // pred_check
        _
      $region10: #{tpu_custom_call.1} parent=5 // pred_check_branch
        %287 = sbr.rel (%p284) target = $region12
      $region11: #{tpu_custom_call.1} parent=5 // pred_region
        %s288 = ssub.s32 %s28, 1
        // Predicated region
        $region13: #{tpu_custom_call.1} parent=11 // pred_check
          %p289 = pneg %p75
        $region14: #{tpu_custom_call.1} parent=11 // pred_check_branch
          %291 = sbr.rel (%p289) target = $region16
        $region15: #{tpu_custom_call.1} parent=11 // pred_region
          %s293 = ssub.s32 512, 512
          %294 = vsyncadd [#allocation6], %s293
          %s295 = sshll.u32 [#allocation5], 4
          %s296 = int_to_ptr.vmem [resolvable:$true] %s295
          %301 = dma.hbm_to_vmem [thread:$0]  %s1, 512, %s296, [#allocation6], 64, 64, 4
        $region16: #{tpu_custom_call.1} parent=11 // pred_fallthru
          _
        // Predicated region
        $region17: #{tpu_custom_call.1} parent=11 // pred_check
          %p302 = pneg %p96
        $region18: #{tpu_custom_call.1} parent=11 // pred_check_branch
          %304 = sbr.rel (%p302) target = $region20
        $region19: #{tpu_custom_call.1} parent=11 // pred_region
          _
        $region20: #{tpu_custom_call.1} parent=11 // pred_fallthru
          _
        // Predicated region
        $region21: #{tpu_custom_call.1} parent=11 // pred_check
          %p305 = pneg %p117
        $region22: #{tpu_custom_call.1} parent=11 // pred_check_branch
          %307 = sbr.rel (%p305) target = $region24
        $region23: #{tpu_custom_call.1} parent=11 // pred_region
          %s309 = ssub.s32 16, 16
          %310 = vsyncadd [#allocation6], %s309
          %s312 = sshll.u32 [#allocation7], 4
          %s313 = int_to_ptr.vmem [resolvable:$true] %s312
          %315 = dma.hbm_to_vmem [thread:$0]  %s3, 16, %s313, [#allocation6]
        $region24: #{tpu_custom_call.1} parent=11 // pred_fallthru
          _
        // Predicated region
        $region25: #{tpu_custom_call.1} parent=11 // pred_check
          %p316 = pneg %p138
        $region26: #{tpu_custom_call.1} parent=11 // pred_check_branch
          %318 = sbr.rel (%p316) target = $region28
        $region27: #{tpu_custom_call.1} parent=11 // pred_region
          %s320 = ssub.s32 16, 16
          %321 = vsyncadd [#allocation9], %s320
          %s323 = sshll.u32 [#allocation8], 4
          %s324 = int_to_ptr.vmem [resolvable:$true] %s323
          %326 = dma.hbm_to_vmem [thread:$0]  %s4, 16, %s324, [#allocation9]
        $region28: #{tpu_custom_call.1} parent=11 // pred_fallthru
          _
        // Predicated region
        $region29: #{tpu_custom_call.1} parent=11 // pred_check
          %p327 = pneg %p159
        $region30: #{tpu_custom_call.1} parent=11 // pred_check_branch
          %329 = sbr.rel (%p327) target = $region32
        $region31: #{tpu_custom_call.1} parent=11 // pred_region
          %s331 = ssub.s32 2048, 2048
          %332 = vsyncadd [#allocation9], %s331
          %s333 = sshll.u32 [#allocation10], 4
          %s334 = int_to_ptr.vmem [resolvable:$true] %s333
          %339 = dma.hbm_to_vmem [thread:$0]  %s5, 2048, %s334, [#allocation9], 128, 128, 8
        $region32: #{tpu_custom_call.1} parent=11 // pred_fallthru
          _
        // Predicated region
        $region33: #{tpu_custom_call.1} parent=11 // pred_check
          %p340 = pneg %p180
        $region34: #{tpu_custom_call.1} parent=11 // pred_check_branch
          %342 = sbr.rel (%p340) target = $region36
        $region35: #{tpu_custom_call.1} parent=11 // pred_region
          _
        $region36: #{tpu_custom_call.1} parent=11 // pred_fallthru
          _
        // Predicated region
        $region37: #{tpu_custom_call.1} parent=11 // pred_check
          %p343 = pneg %p201
        $region38: #{tpu_custom_call.1} parent=11 // pred_check_branch
          %345 = sbr.rel (%p343) target = $region40
        $region39: #{tpu_custom_call.1} parent=11 // pred_region
          _
        $region40: #{tpu_custom_call.1} parent=11 // pred_fallthru
          _
        // Predicated region
        $region41: #{tpu_custom_call.1} parent=11 // pred_check
          %p346 = pneg %p222
        $region42: #{tpu_custom_call.1} parent=11 // pred_check_branch
          %348 = sbr.rel (%p346) target = $region44
        $region43: #{tpu_custom_call.1} parent=11 // pred_region
          _
        $region44: #{tpu_custom_call.1} parent=11 // pred_fallthru
          _
      $region12: #{tpu_custom_call.1} parent=5 // pred_fallthru
        _
      %p349 = scmp.lt.s32.totalorder %s28, 2
      // Predicated region
      $region45: #{tpu_custom_call.1} parent=5 // pred_check
        %p350 = pneg %p349
      $region46: #{tpu_custom_call.1} parent=5 // pred_check_branch
        %352 = sbr.rel (%p350) target = $region48
      $region47: #{tpu_custom_call.1} parent=5 // pred_region
        // Predicated region
        $region49: #{tpu_custom_call.1} parent=47 // pred_check
          %p353 = pneg %p48
        $region50: #{tpu_custom_call.1} parent=47 // pred_check_branch
          %355 = sbr.rel (%p353) target = $region52
        $region51: #{tpu_custom_call.1} parent=47 // pred_region
          %s356 = sand.u32 %s38, 1
          %s357 = scalar_lea.sflag [#allocation3], %s356
          %s358 = sand.u32 %s38, 1
          %s359 = smul.addr %s358, 8
          %s360 = scalar_lea.vmem [#allocation2], %s359
          %s362 = ssub.s32 128, 128
          %363 = vsyncadd %s357, %s362
          %s364 = smul.addr %s28, 128
          %s365 = scalar_lea.hbm %s0, %s364
          %s367 = sshll.u32 %s360, 4
          %s368 = int_to_ptr.vmem [resolvable:$true] %s367
          %370 = dma.hbm_to_vmem [thread:$0]  %s365, 128, %s368, %s357
        $region52: #{tpu_custom_call.1} parent=47 // pred_fallthru
          _
      $region48: #{tpu_custom_call.1} parent=5 // pred_fallthru
        _
      %p371 = scmp.le.s32.totalorder 1, %s28
      %p372 = scmp.lt.s32.totalorder %s28, 3
      %p373 = pnand %p371, %p372
      %p374 = pneg %p373
      // Predicated region
      $region53: #{tpu_custom_call.1} parent=5 // pred_check
        _
      $region54: #{tpu_custom_call.1} parent=5 // pred_check_branch
        %376 = sbr.rel (%p373) target = $region56
      $region55: #{tpu_custom_call.1} parent=5 // pred_region
        %s377 = ssub.s32 %s28, 1
        %s378 = sand.u32 %s41, 1
        %s379 = scalar_lea.sflag [#allocation3], %s378
        %s380 = sand.u32 %s41, 1
        %s381 = smul.addr %s380, 8
        %s382 = scalar_lea.vmem [#allocation2], %s381
        // Predicated region
        $region57: #{tpu_custom_call.1} parent=55 // pred_check
          %p383 = pneg %p54
        $region58: #{tpu_custom_call.1} parent=55 // pred_check_branch
          %385 = sbr.rel (%p383) target = $region60
        $region59: #{tpu_custom_call.1} parent=55 // pred_region
          %386 = dma.done %s379, 128
        $region60: #{tpu_custom_call.1} parent=55 // pred_fallthru
          _
        // Predicated region
        $region61: #{tpu_custom_call.1} parent=55 // pred_check
          %p387 = pneg %p75
        $region62: #{tpu_custom_call.1} parent=55 // pred_check_branch
          %389 = sbr.rel (%p387) target = $region64
        $region63: #{tpu_custom_call.1} parent=55 // pred_region
          %390 = dma.done [#allocation6], 512
        $region64: #{tpu_custom_call.1} parent=55 // pred_fallthru
          _
        // Predicated region
        $region65: #{tpu_custom_call.1} parent=55 // pred_check
          %p391 = pneg %p117
        $region66: #{tpu_custom_call.1} parent=55 // pred_check_branch
          %393 = sbr.rel (%p391) target = $region68
        $region67: #{tpu_custom_call.1} parent=55 // pred_region
          %394 = dma.done [#allocation6], 16
        $region68: #{tpu_custom_call.1} parent=55 // pred_fallthru
          _
        // Predicated region
        $region69: #{tpu_custom_call.1} parent=55 // pred_check
          %p395 = pneg %p138
        $region70: #{tpu_custom_call.1} parent=55 // pred_check_branch
          %397 = sbr.rel (%p395) target = $region72
        $region71: #{tpu_custom_call.1} parent=55 // pred_region
          %398 = dma.done [#allocation9], 16
        $region72: #{tpu_custom_call.1} parent=55 // pred_fallthru
          _
        // Predicated region
        $region73: #{tpu_custom_call.1} parent=55 // pred_check
          %p399 = pneg %p159
        $region74: #{tpu_custom_call.1} parent=55 // pred_check_branch
          %401 = sbr.rel (%p399) target = $region76
        $region75: #{tpu_custom_call.1} parent=55 // pred_region
          %402 = dma.done [#allocation9], 2048
        $region76: #{tpu_custom_call.1} parent=55 // pred_fallthru
          _
        %s403 = sand.u32 %s41, 1
        %s404 = scalar_lea.sflag [#allocation3], %s403
        %s405 = sand.u32 %s41, 1
        %s406 = smul.addr %s405, 8
        %s407 = scalar_lea.vmem [#allocation2], %s406
        %p408 = pneg %p54
        %p409 = pneg %p51
        %p410 = pneg %p75
        %p411 = pneg %p72
        %p412 = pneg %p96
        %p413 = pneg %p93
        %p414 = pneg %p117
        %p415 = pneg %p114
        %p416 = pneg %p138
        %p417 = pneg %p135
        %p418 = pneg %p159
        %p419 = pneg %p156
        %p420 = pneg %p180
        %p421 = pneg %p177
        %p422 = pneg %p201
        %p423 = pneg %p198
        %p424 = pneg %p222
        %p425 = pneg %p219
        %p426 = pneg %p248
        %p427 = pneg %p245
        %s428 = sand.u32 %s235, 1
        %s429 = scalar_lea.sflag [#allocation4], %s428
        %s430 = sand.u32 %s235, 1
        %s431 = smul.addr %s430, 8
        %s432 = scalar_lea.vmem [#allocation11], %s431
        %p433 = pneg %p274
        %p434 = pneg %p271
        %s435 = sand.u32 %s261, 1
        %s436 = scalar_lea.sflag [#allocation13], %s435
        %s437 = sand.u32 %s261, 1
        %s438 = smul.addr %s437, 8
        %s439 = scalar_lea.vmem [#allocation12], %s438
        %v441 = vld [vmem:[%s382] sm:$0xff]
        %v442 = vpack.c.bf16 %v441, %v441
        %v443 = vld [vmem:[#allocation5] sm:$0xf]
        %v444 = vld [vmem:[#allocation5 + $0x4] sm:$0xf]
        %v445 = vld [vmem:[#allocation5 + $0x8] sm:$0xf]
        %v446 = vld [vmem:[#allocation5 + $0xc] sm:$0xf]
        %v447 = vld [vmem:[#allocation5 + $0x10] sm:$0xf]
        %v448 = vld [vmem:[#allocation5 + $0x14] sm:$0xf]
        %v449 = vld [vmem:[#allocation5 + $0x18] sm:$0xf]
        %v450 = vld [vmem:[#allocation5 + $0x1c] sm:$0xf]
        %v451 = vld [vmem:[%s2] sm:$0x1]
        %v453 = vlaneseq
        %v454 = vshrl.u32 %v453, 7
        %v455 = vsub.s32 0, %v454
        %v456 = vrot.slane %v451, %v455
        %v466 = vunpack.c.l.b16 %v443
        %v467 = vunpack.c.l.b16 %v444
        %v468 = vunpack.c.l.b16 %v445
        %v469 = vunpack.c.l.b16 %v446
        %v470 = vunpack.c.l.b16 %v447
        %v471 = vunpack.c.l.b16 %v448
        %v472 = vunpack.c.l.b16 %v449
        %v473 = vunpack.c.l.b16 %v450
        %v474 = vpack.c.b16 %v467, %v466
        %v475 = vpack.c.b16 %v469, %v468
        %v476 = vpack.c.b16 %v471, %v470
        %v477 = vpack.c.b16 %v473, %v472
        %vm482 = vcmask 523264
        %v484 = vsel %vm482, %v442, 0
        %486 = vmatprep.subr.bf16.mxu0 0
        %487 = vmatpush1.bf16.msra.mxu0 0
        %488 = vmatprep.subr.bf16.mxu0 0
        %489 = vmatpush1.bf16.msra.mxu0 0
        %490 = vmatprep.subr.bf16.mxu0 0
        %491 = vmatpush1.bf16.msra.mxu0 0
        %492 = vmatprep.subr.bf16.mxu0 0
        %493 = vmatpush1.bf16.msra.mxu0 0
        %494 = vmatprep.subr.bf16.mxu0 0
        %495 = vmatpush1.bf16.msra.mxu0 %v477
        %496 = vmatprep.subr.bf16.mxu0 0
        %497 = vmatpush1.bf16.msra.mxu0 %v476
        %498 = vmatprep.subr.bf16.mxu0 0
        %499 = vmatpush1.bf16.msra.mxu0 %v475
        %500 = vmatprep.subr.bf16.mxu0 0
        %501 = vmatpush1.bf16.msra.mxu0 %v474
        %502 = vmatprep.subr.bf16.mxu0 0
        %503 = vmatpush2.bf16.msra.mxu0 0
        %504 = vmatprep.subr.bf16.mxu0 0
        %505 = vmatpush2.bf16.msra.mxu0 0
        %506 = vmatprep.subr.bf16.mxu0 0
        %507 = vmatpush2.bf16.msra.mxu0 0
        %508 = vmatprep.subr.bf16.mxu0 0
        %509 = vmatpush2.bf16.msra.mxu0 0
        %510 = vmatprep.subr.bf16.mxu0 0
        %511 = vmatpush2.bf16.msra.mxu0 0
        %512 = vmatprep.subr.bf16.mxu0 0
        %513 = vmatpush2.bf16.msra.mxu0 0
        %514 = vmatprep.subr.bf16.mxu0 0
        %515 = vmatpush2.bf16.msra.mxu0 0
        %516 = vmatprep.subr.bf16.mxu0 0
        %517 = vmatpush2.bf16.msra.mxu0 0
        %518 = vmatprep.mubr.bf16.mxu0 0
        %519 = vmatmul.mubr.bf16.gmra.mxu0 %v484
        %v520 = vpop.f32.mrf.mxu0
        %v521 = vadd.f32 %v456, %v520
        %v522 = vpop.f32.mrf.mxu0
        %v523 = vpop.f32.mrf.mxu0
        %v524 = vpop.f32.mrf.mxu0
        %525 = vdwg.mxu0
        %v526 = vld [vmem:[#allocation7] sm:$0x1]
        %v527 = vld [vmem:[#allocation8] sm:$0x1]
        %528 = vadd.xlane.f32.xlu0 %v521
        %v529 = vpop.xlane.xlu0 %528
        %v530 = vrcp.pop 128.0
        %v531 = vmul.f32 %v529, %v530
        %v532 = vsub.f32 %v521, %v531
        %v533 = vmul.f32 %v532, %v532
        %534 = vadd.xlane.f32.xlu0 %v533
        %v535 = vpop.xlane.xlu0 %534
        %v536 = vmul.f32 %v535, %v530
        %v537 = vadd.f32 %v536, 1e-05
        %v538 = vrsqrt.pop %v537
        %v539 = vmul.f32 %v532, %v538
        %v541 = vlaneseq
        %v542 = vshrl.u32 %v541, 7
        %v543 = vsub.s32 0, %v542
        %v544 = vrot.slane %v526, %v543
        %v546 = vmul.f32 %v539, %v544
        %v548 = vlaneseq
        %v549 = vshrl.u32 %v548, 7
        %v550 = vsub.s32 0, %v549
        %v551 = vrot.slane %v527, %v550
        %v553 = vadd.f32 %v546, %v551
        %v554 = vtanh.pop %v553
        %v555 = vpack.c.bf16 %v554, %v554
        %v556 = vld [vmem:[#allocation10] sm:$0xff]
        %v557 = vld [vmem:[#allocation10 + $0x8] sm:$0xff]
        %v558 = vld [vmem:[#allocation10 + $0x10] sm:$0xff]
        %v559 = vld [vmem:[#allocation10 + $0x18] sm:$0xff]
        %v560 = vld [vmem:[#allocation10 + $0x20] sm:$0xff]
        %v561 = vld [vmem:[#allocation10 + $0x28] sm:$0xff]
        %v562 = vld [vmem:[#allocation10 + $0x30] sm:$0xff]
        %v563 = vld [vmem:[#allocation10 + $0x38] sm:$0xff]
        %v564 = vld [vmem:[#allocation10 + $0x40] sm:$0xff]
        %v565 = vld [vmem:[#allocation10 + $0x48] sm:$0xff]
        %v566 = vld [vmem:[#allocation10 + $0x50] sm:$0xff]
        %v567 = vld [vmem:[#allocation10 + $0x58] sm:$0xff]
        %v568 = vld [vmem:[#allocation10 + $0x60] sm:$0xff]
        %v569 = vld [vmem:[#allocation10 + $0x68] sm:$0xff]
        %v570 = vld [vmem:[#allocation10 + $0x70] sm:$0xff]
        %v571 = vld [vmem:[#allocation10 + $0x78] sm:$0xff]
        %v572 = vld [vmem:[%s6] sm:$0x3]
        %v574 = vlaneseq
        %v575 = vshrl.u32 %v574, 7
        %v576 = vsub.s32 0, %v575
        %v577 = vrot.slane %v572, %v576
        %v578 = vlaneseq
        %v579 = vshrl.u32 %v578, 7
        %v580 = vsub.s32 1, %v579
        %v581 = vrot.slane %v572, %v580
        %v600 = vunpack.c.l.b16 %v556
        %v601 = vunpack.c.h.b16 %v556
        %v602 = vunpack.c.l.b16 %v557
        %v603 = vunpack.c.h.b16 %v557
        %v604 = vunpack.c.l.b16 %v558
        %v605 = vunpack.c.h.b16 %v558
        %v606 = vunpack.c.l.b16 %v559
        %v607 = vunpack.c.h.b16 %v559
        %v608 = vunpack.c.l.b16 %v560
        %v609 = vunpack.c.h.b16 %v560
        %v610 = vunpack.c.l.b16 %v561
        %v611 = vunpack.c.h.b16 %v561
        %v612 = vunpack.c.l.b16 %v562
        %v613 = vunpack.c.h.b16 %v562
        %v614 = vunpack.c.l.b16 %v563
        %v615 = vunpack.c.h.b16 %v563
        %v616 = vunpack.c.l.b16 %v564
        %v617 = vunpack.c.h.b16 %v564
        %v618 = vunpack.c.l.b16 %v565
        %v619 = vunpack.c.h.b16 %v565
        %v620 = vunpack.c.l.b16 %v566
        %v621 = vunpack.c.h.b16 %v566
        %v622 = vunpack.c.l.b16 %v567
        %v623 = vunpack.c.h.b16 %v567
        %v624 = vunpack.c.l.b16 %v568
        %v625 = vunpack.c.h.b16 %v568
        %v626 = vunpack.c.l.b16 %v569
        %v627 = vunpack.c.h.b16 %v569
        %v628 = vunpack.c.l.b16 %v570
        %v629 = vunpack.c.h.b16 %v570
        %v630 = vunpack.c.l.b16 %v571
        %v631 = vunpack.c.h.b16 %v571
        %v632 = vpack.c.b16 %v602, %v600
        %v633 = vpack.c.b16 %v603, %v601
        %v634 = vpack.c.b16 %v606, %v604
        %v635 = vpack.c.b16 %v607, %v605
        %v636 = vpack.c.b16 %v610, %v608
        %v637 = vpack.c.b16 %v611, %v609
        %v638 = vpack.c.b16 %v614, %v612
        %v639 = vpack.c.b16 %v615, %v613
        %v640 = vpack.c.b16 %v618, %v616
        %v641 = vpack.c.b16 %v619, %v617
        %v642 = vpack.c.b16 %v622, %v620
        %v643 = vpack.c.b16 %v623, %v621
        %v644 = vpack.c.b16 %v626, %v624
        %v645 = vpack.c.b16 %v627, %v625
        %v646 = vpack.c.b16 %v630, %v628
        %v647 = vpack.c.b16 %v631, %v629
        %664 = vmatprep.subr.bf16.mxu0 %v647
        %665 = vmatpush1.bf16.msra.mxu0 %v646
        %666 = vmatprep.subr.bf16.mxu0 %v645
        %667 = vmatpush1.bf16.msra.mxu0 %v644
        %668 = vmatprep.subr.bf16.mxu0 %v643
        %669 = vmatpush1.bf16.msra.mxu0 %v642
        %670 = vmatprep.subr.bf16.mxu0 %v641
        %671 = vmatpush1.bf16.msra.mxu0 %v640
        %672 = vmatprep.subr.bf16.mxu0 %v639
        %673 = vmatpush1.bf16.msra.mxu0 %v638
        %674 = vmatprep.subr.bf16.mxu0 %v637
        %675 = vmatpush1.bf16.msra.mxu0 %v636
        %676 = vmatprep.subr.bf16.mxu0 %v635
        %677 = vmatpush1.bf16.msra.mxu0 %v634
        %678 = vmatprep.subr.bf16.mxu0 %v633
        %679 = vmatpush1.bf16.msra.mxu0 %v632
        %680 = vmatprep.subr.bf16.mxu0 0
        %681 = vmatpush2.bf16.msra.mxu0 0
        %682 = vmatprep.subr.bf16.mxu0 0
        %683 = vmatpush2.bf16.msra.mxu0 0
        %684 = vmatprep.subr.bf16.mxu0 0
        %685 = vmatpush2.bf16.msra.mxu0 0
        %686 = vmatprep.subr.bf16.mxu0 0
        %687 = vmatpush2.bf16.msra.mxu0 0
        %688 = vmatprep.subr.bf16.mxu0 0
        %689 = vmatpush2.bf16.msra.mxu0 0
        %690 = vmatprep.subr.bf16.mxu0 0
        %691 = vmatpush2.bf16.msra.mxu0 0
        %692 = vmatprep.subr.bf16.mxu0 0
        %693 = vmatpush2.bf16.msra.mxu0 0
        %694 = vmatprep.subr.bf16.mxu0 0
        %695 = vmatpush2.bf16.msra.mxu0 0
        %696 = vmatprep.mubr.bf16.mxu0 0
        %697 = vmatmul.mubr.bf16.gmra.mxu0 %v555
        %v698 = vpop.f32.mrf.mxu0
        %v699 = vadd.f32 %v577, %v698
        %v700 = vpop.f32.mrf.mxu0
        %v701 = vadd.f32 %v581, %v700
        %v702 = vpop.f32.mrf.mxu0
        %v703 = vpop.f32.mrf.mxu0
        %704 = vdwg.mxu0
        %v705 = vld [vmem:[%s7] sm:$0x1]
        %v706 = vld [vmem:[%s8] sm:$0x1]
        %707 = vadd.xlane.f32.xlu0 %v699
        %v708 = vpop.xlane.xlu0 %707
        %v709 = vmul.f32 %v708, %v530
        %v710 = vsub.f32 %v699, %v709
        %v711 = vmul.f32 %v710, %v710
        %712 = vadd.xlane.f32.xlu0 %v711
        %v713 = vpop.xlane.xlu0 %712
        %v714 = vmul.f32 %v713, %v530
        %v715 = vadd.f32 %v714, 1e-05
        %v716 = vrsqrt.pop %v715
        %v717 = vmul.f32 %v710, %v716
        %v719 = vlaneseq
        %v720 = vshrl.u32 %v719, 7
        %v721 = vsub.s32 0, %v720
        %v722 = vrot.slane %v705, %v721
        %v724 = vmul.f32 %v717, %v722
        %v726 = vlaneseq
        %v727 = vshrl.u32 %v726, 7
        %v728 = vsub.s32 0, %v727
        %v729 = vrot.slane %v706, %v728
        %v731 = vadd.f32 %v724, %v729
        %v732 = vtanh.pop %v731
        %v733 = vld [vmem:[%s7 + $0x1] sm:$0x1]
        %v734 = vld [vmem:[%s8 + $0x1] sm:$0x1]
        %735 = vadd.xlane.f32.xlu0 %v701
        %v736 = vpop.xlane.xlu0 %735
        %v737 = vmul.f32 %v736, %v530
        %v738 = vsub.f32 %v701, %v737
        %v739 = vmul.f32 %v738, %v738
        %740 = vadd.xlane.f32.xlu0 %v739
        %v741 = vpop.xlane.xlu0 %740
        %v742 = vmul.f32 %v741, %v530
        %v743 = vadd.f32 %v742, 1e-05
        %v744 = vrsqrt.pop %v743
        %v745 = vmul.f32 %v738, %v744
        %v747 = vlaneseq
        %v748 = vshrl.u32 %v747, 7
        %v749 = vsub.s32 0, %v748
        %v750 = vrot.slane %v733, %v749
        %v752 = vmul.f32 %v745, %v750
        %v754 = vlaneseq
        %v755 = vshrl.u32 %v754, 7
        %v756 = vsub.s32 0, %v755
        %v757 = vrot.slane %v734, %v756
        %v759 = vadd.f32 %v752, %v757
        %v760 = vtanh.pop %v759
        %761 = vst [vmem:[%s432] sm:$0xff] %v732
        %762 = vst [vmem:[%s439] sm:$0xff] %v760
        %s763 = sand.u32 %s235, 1
        %s764 = scalar_lea.sflag [#allocation4], %s763
        %s765 = sand.u32 %s235, 1
        %s766 = smul.addr %s765, 8
        %s767 = scalar_lea.vmem [#allocation11], %s766
        %s768 = sand.u32 %s261, 1
        %s769 = scalar_lea.sflag [#allocation13], %s768
        %s770 = sand.u32 %s261, 1
        %s771 = smul.addr %s770, 8
        %s772 = scalar_lea.vmem [#allocation12], %s771
        // Predicated region
        $region77: #{tpu_custom_call.1} parent=55 // pred_check
          %p773 = pneg %p245
        $region78: #{tpu_custom_call.1} parent=55 // pred_check_branch
          %775 = sbr.rel (%p773) target = $region80
        $region79: #{tpu_custom_call.1} parent=55 // pred_region
          %s777 = ssub.s32 128, 128
          %778 = vsyncadd %s764, %s777
          %s779 = smul.addr %s33, 128
          %s780 = scalar_lea.hbm %s9, %s779
          %s782 = sshll.u32 %s767, 4
          %s783 = int_to_ptr.vmem [resolvable:$true] %s782
          %785 = dma.vmem_to_hbm [thread:$0]  %s783, 128, %s780, %s764
        $region80: #{tpu_custom_call.1} parent=55 // pred_fallthru
          _
        // Predicated region
        $region81: #{tpu_custom_call.1} parent=55 // pred_check
          %p786 = pneg %p271
        $region82: #{tpu_custom_call.1} parent=55 // pred_check_branch
          %788 = sbr.rel (%p786) target = $region84
        $region83: #{tpu_custom_call.1} parent=55 // pred_region
          %s790 = ssub.s32 128, 128
          %791 = vsyncadd %s769, %s790
          %s792 = smul.addr %s33, 128
          %s793 = scalar_lea.hbm %s10, %s792
          %s795 = sshll.u32 %s772, 4
          %s796 = int_to_ptr.vmem [resolvable:$true] %s795
          %798 = dma.vmem_to_hbm [thread:$0]  %s796, 128, %s793, %s769
        $region84: #{tpu_custom_call.1} parent=55 // pred_fallthru
          _
      $region56: #{tpu_custom_call.1} parent=5 // pred_fallthru
        _
      %p799 = scmp.le.s32.totalorder 2, %s28
      // Predicated region
      $region85: #{tpu_custom_call.1} parent=5 // pred_check
        %p800 = pneg %p799
      $region86: #{tpu_custom_call.1} parent=5 // pred_check_branch
        %802 = sbr.rel (%p800) target = $region88
      $region87: #{tpu_custom_call.1} parent=5 // pred_region
        %s803 = ssub.s32 %s28, 2
        // Predicated region
        $region89: #{tpu_custom_call.1} parent=87 // pred_check
          %p804 = pneg %p251
        $region90: #{tpu_custom_call.1} parent=87 // pred_check_branch
          %806 = sbr.rel (%p804) target = $region92
        $region91: #{tpu_custom_call.1} parent=87 // pred_region
          %s807 = sand.u32 %s236, 1
          %s808 = scalar_lea.sflag [#allocation4], %s807
          %s809 = sand.u32 %s236, 1
          %s810 = smul.addr %s809, 8
          %s811 = scalar_lea.vmem [#allocation11], %s810
          %812 = dma.done %s808, 128
        $region92: #{tpu_custom_call.1} parent=87 // pred_fallthru
          _
        // Predicated region
        $region93: #{tpu_custom_call.1} parent=87 // pred_check
          %p813 = pneg %p277
        $region94: #{tpu_custom_call.1} parent=87 // pred_check_branch
          %815 = sbr.rel (%p813) target = $region96
        $region95: #{tpu_custom_call.1} parent=87 // pred_region
          %s816 = sand.u32 %s262, 1
          %s817 = scalar_lea.sflag [#allocation13], %s816
          %s818 = sand.u32 %s262, 1
          %s819 = smul.addr %s818, 8
          %s820 = scalar_lea.vmem [#allocation12], %s819
          %821 = dma.done %s817, 128
        $region96: #{tpu_custom_call.1} parent=87 // pred_fallthru
          _
      $region88: #{tpu_custom_call.1} parent=5 // pred_fallthru
        _
    $region6: #{tpu_custom_call.1} parent=1 // loop_footer
      %s32 = sadd.s32 1, %s28
    $region7: #{tpu_custom_call.1} parent=1 // loop_footer_branch
      %27 = sbr.rel target = $region3
    $region8: #{tpu_custom_call.1} parent=1 // loop_exit
      _
    %822 = vsyncpa [#allocation3], 1
    %s823 = scalar_lea.sflag [#allocation3], 1
    %824 = vsyncpa %s823, 1
    %825 = vsyncpa [#allocation6], 1
    %826 = vsyncpa [#allocation9], 1
    %827 = vsyncpa [#allocation4], 1
    %s828 = scalar_lea.sflag [#allocation4], 1
    %829 = vsyncpa %s828, 1
    %830 = vsyncpa [#allocation13], 1
    %s831 = scalar_lea.sflag [#allocation13], 1
    %832 = vsyncpa %s831, 1

</llo_original>
